<compile_context>
chip_gen: v5e
topology: v5e:2x2
jax: 0.10.0
libtpu: 0.0.40
codegen_flags: <defaults>
</compile_context>

<pallas_src>
import math

import jax
import jax.numpy as jnp
from jax.experimental import pallas as pl
from jax.experimental.pallas import tpu as pltpu


def _round_up(x, m):
    return (x + m - 1) // m * m


def _gmm_attention_kernel(vfloor, n_mix, kt):
    """One (batch block, klen tile) per grid step; klen on the lane axis."""

    def kernel(q_ref, w_ref, b_ref, myup_ref, value_ref, mask_ref,
               cv_ref, alpha_ref, myu_ref,
               coeff_sc, invvar_sc, myu_sc):
        k_idx = pl.program_id(1)

        # ---- once per batch block: fused projections + softmax / exp ------
        @pl.when(k_idx == 0)
        def _():
            # [g | beta | kappa] = q @ [Wg | Wb | Wk] + [bg | bb | bk]
            proj = jnp.dot(q_ref[...], w_ref[...],
                           preferred_element_type=jnp.float32) + b_ref[...]
            g = proj[:, 0 * n_mix:1 * n_mix]
            beta = proj[:, 1 * n_mix:2 * n_mix]
            kappa = proj[:, 2 * n_mix:3 * n_mix]

            # softmax over mixtures
            g = g - jnp.max(g, axis=-1, keepdims=True)
            eg = jnp.exp(g)
            w = eg / jnp.sum(eg, axis=-1, keepdims=True)          # (B_blk, n_mix)

            v = jnp.exp(beta)                                     # (B_blk, n_mix)
            myu = jnp.exp(kappa) + myup_ref[:, 0, :]              # (B_blk, n_mix)

            myu_sc[...] = myu
            myu_ref[...] = myu[:, None, :]

            # divides hoisted out of the klen loop (computed once per block)
            coeff_sc[...] = w / jnp.sqrt(2.0 * math.pi * v + vfloor)
            invvar_sc[...] = 1.0 / (2.0 * v + vfloor)

            # init the resident cv accumulator (output block revisited over k)
            cv_ref[...] = jnp.zeros_like(cv_ref)

        # ---- per klen tile: GMM attention weights + cv accumulation -------
        b_blk = q_ref.shape[0]
        js = (jax.lax.broadcasted_iota(jnp.int32, (b_blk, n_mix, kt), 2)
              + k_idx * kt).astype(jnp.float32)                   # (B_blk, n_mix, KT)
        diff = js - myu_sc[...][:, :, None]
        numerator = jnp.exp(-(diff * diff) * invvar_sc[...][:, :, None])
        aw = jnp.sum(coeff_sc[...][:, :, None] * numerator,
                     axis=1, keepdims=True)                       # (B_blk, 1, KT)

        # masked_fill(mask == 0, NEG_INF) -- matches the torch module (the
        # filled aw also feeds the cv bmm, exactly as in the reference).
        neg_inf = jnp.finfo(jnp.float32).min
        aw = jnp.where(mask_ref[...] == 0, neg_inf, aw)

        alpha_ref[...] = aw                                       # lane-dense store
        # cv accumulation on the MXU: (1 x KT) @ (KT x vdim) per batch element
        cv_ref[...] += jnp.einsum('bqk,bkv->bqv', aw, value_ref[...],
                                  preferred_element_type=jnp.float32)

    return kernel


def gmm_attention_forward(query, value, params, myu_prev, mask=None,
                          vfloor=1e-6, klen_tile=512):
    """Returns (cv [B,1,vdim], alpha [B,1,1,klen], myu_new [B,1,n_mix])."""
    B, klen, vdim = value.shape
    qdim = query.shape[-1]
    n_mix = params["Wg"].shape[-1]
    assert klen_tile % 128 == 0

    # Fused projection weights / biases: [gamma | beta | kappa].
    W = jnp.concatenate([params["Wg"], params["Wb"], params["Wk"]], axis=-1)
    bias = jnp.concatenate([params["bg"], params["bb"], params["bk"]], axis=-1)

    # Batch blocking: fill the 8-sublane axis when possible.
    b_blk = B if B <= 8 else 8
    b_pad = _round_up(B, b_blk)

    # klen tiling: a single tile for short sequences, else 128-aligned tiles
    # (keeps the double-buffered value tile modest -- also fits v7x's smaller
    # 64 MiB VMEM at the default klen_tile).
    if klen <= klen_tile:
        kt, k_pad = klen, klen
    else:
        kt = klen_tile
        k_pad = _round_up(klen, kt)
    nk = k_pad // kt

    q2 = query.reshape(B, qdim).astype(jnp.float32)
    mask3 = (jnp.ones((B, 1, klen), jnp.int32) if mask is None
             else mask.astype(jnp.int32).reshape(B, 1, klen))
    value_p = value.astype(jnp.float32)
    myu_prev_p = myu_prev.astype(jnp.float32)

    if b_pad != B:
        db = b_pad - B
        q2 = jnp.pad(q2, ((0, db), (0, 0)))
        myu_prev_p = jnp.pad(myu_prev_p, ((0, db), (0, 0), (0, 0)))
        value_p = jnp.pad(value_p, ((0, db), (0, 0), (0, 0)))
        mask3 = jnp.pad(mask3, ((0, db), (0, 0), (0, 0)), constant_values=1)
    if k_pad != klen:
        dk = k_pad - klen
        value_p = jnp.pad(value_p, ((0, 0), (0, dk), (0, 0)))  # zero value => no cv leak
        mask3 = jnp.pad(mask3, ((0, 0), (0, 0), (0, dk)), constant_values=1)

    grid = (b_pad // b_blk, nk)

    out_shapes = (
        jax.ShapeDtypeStruct((b_pad, 1, vdim), jnp.float32),     # cv
        jax.ShapeDtypeStruct((b_pad, 1, k_pad), jnp.float32),    # alpha (lane-dense)
        jax.ShapeDtypeStruct((b_pad, 1, n_mix), jnp.float32),    # myu_new
    )

    cv, alpha_k, myu_new = pl.pallas_call(
        _gmm_attention_kernel(vfloor, n_mix, kt),
        out_shape=out_shapes,
        grid=grid,
        in_specs=[
            pl.BlockSpec((b_blk, qdim), lambda bi, ki: (bi, 0)),           # query
            pl.BlockSpec((qdim, 3 * n_mix), lambda bi, ki: (0, 0)),        # fused W
            pl.BlockSpec((1, 3 * n_mix), lambda bi, ki: (0, 0)),           # fused bias
            pl.BlockSpec((b_blk, 1, n_mix), lambda bi, ki: (bi, 0, 0)),    # myu_prev
            pl.BlockSpec((b_blk, kt, vdim), lambda bi, ki: (bi, ki, 0)),   # value
            pl.BlockSpec((b_blk, 1, kt), lambda bi, ki: (bi, 0, ki)),      # mask
        ],
        out_specs=[
            pl.BlockSpec((b_blk, 1, vdim), lambda bi, ki: (bi, 0, 0)),     # cv (revisited)
            pl.BlockSpec((b_blk, 1, kt), lambda bi, ki: (bi, 0, ki)),      # alpha
            pl.BlockSpec((b_blk, 1, n_mix), lambda bi, ki: (bi, 0, 0)),    # myu (revisited)
        ],
        scratch_shapes=[
            pltpu.VMEM((b_blk, n_mix), jnp.float32),   # coeff = w / sqrt(2*pi*v + vfloor)
            pltpu.VMEM((b_blk, n_mix), jnp.float32),   # 1 / (2*v + vfloor)
            pltpu.VMEM((b_blk, n_mix), jnp.float32),   # myu
        ],
        compiler_params=pltpu.CompilerParams(
            dimension_semantics=("parallel", "arbitrary")),
    )(q2, W, bias, myu_prev_p, value_p, mask3)

    cv = cv[:B]
    myu_new = myu_new[:B]
    # torch returns aw.unsqueeze(2): [B, 1, 1, klen]
    alpha = alpha_k[:B, :, :klen][:, :, None, :]
    return cv, alpha, myu_new


def reference_forward(query, value, params, myu_prev, mask=None, vfloor=1e-6):
    g = query @ params["Wg"] + params["bg"]
    w = jax.nn.softmax(g, axis=-1)
    v = jnp.exp(query @ params["Wb"] + params["bb"])
    myu = jnp.exp(query @ params["Wk"] + params["bk"]) + myu_prev
    B, klen, _ = value.shape
    n_mix = myu.shape[-1]
    js = jnp.broadcast_to(jnp.arange(klen, dtype=jnp.float32)[None, :, None],
                          (B, klen, n_mix))
    numerator = jnp.exp(-jnp.square(js - myu) / (2.0 * v + vfloor))
    denominator = jnp.sqrt(2.0 * math.pi * v + vfloor)
    aw = jnp.sum(w * numerator / denominator, axis=2)[:, None, :]   # [B,1,klen]
    if mask is not None:
        aw = jnp.where(mask == 0, jnp.finfo(jnp.float32).min, aw)
    cv = jnp.einsum("bik,bkv->biv", aw, value)
    return cv, aw[:, :, None, :], myu


if __name__ == "__main__":
    B, klen, kdim, qdim, vdim, n_mix = 2, 8, 32, 32, 32, 4
    vfloor = 1e-6

    key = jax.random.PRNGKey(0)
    ks = jax.random.split(key, 10)
    # Deterministic synthetic parameters (shapes from nn.Linear(qdim, n_mixtures),
    # stored transposed so forward is q @ W + b).
    params = {
        "Wg": jax.random.uniform(ks[0], (qdim, n_mix), jnp.float32, -0.1, 0.1),
        "bg": jax.random.uniform(ks[1], (1, n_mix), jnp.float32, -0.1, 0.1),
        "Wb": jax.random.uniform(ks[2], (qdim, n_mix), jnp.float32, -0.1, 0.1),
        "bb": jax.random.uniform(ks[3], (1, n_mix), jnp.float32, -0.1, 0.1),
        "Wk": jax.random.uniform(ks[4], (qdim, n_mix), jnp.float32, -0.1, 0.1),
        "bk": jax.random.uniform(ks[5], (1, n_mix), jnp.float32, -0.1, 0.1),
    }

    key_t = jax.random.normal(ks[6], (B, klen, kdim), jnp.float32)  # only shape used
    value = jax.random.normal(ks[7], (B, klen, vdim), jnp.float32)
    query = jax.random.normal(ks[8], (B, 1, qdim), jnp.float32)
    mask = jnp.ones((B, 1, klen), jnp.int32)                        # all-valid mask
    myu_prev = jnp.zeros((B, 1, n_mix), jnp.float32)                # first decoding step

    cv, alpha, myu_new = gmm_attention_forward(query, value, params, myu_prev,
                                               mask=mask, vfloor=vfloor)
    jax.block_until_ready((cv, alpha, myu_new))

    cv_ref, alpha_ref, myu_ref = reference_forward(query, value, params, myu_prev,
                                                   mask=mask, vfloor=vfloor)
    assert cv.shape == (B, 1, vdim) and alpha.shape == (B, 1, 1, klen)
    assert jnp.allclose(cv, cv_ref, rtol=1e-5, atol=1e-5)
    assert jnp.allclose(alpha, alpha_ref, rtol=1e-5, atol=1e-5)
    assert jnp.allclose(myu_new, myu_ref, rtol=1e-5, atol=1e-5)

    print("KERNEL_OK")
</pallas_src>

<mosaic_0001>
module attributes {stable_mosaic.version = 11 : i64} {
  func.func @kernel(%arg0: i32, %arg1: i32, %arg2: memref<2x32xf32, #tpu.memory_space<vmem>>, %arg3: memref<32x12xf32, #tpu.memory_space<vmem>>, %arg4: memref<1x12xf32, #tpu.memory_space<vmem>>, %arg5: memref<2x1x4xf32, #tpu.memory_space<vmem>>, %arg6: memref<2x8x32xf32, #tpu.memory_space<vmem>>, %arg7: memref<2x1x8xi32, #tpu.memory_space<vmem>>, %arg8: memref<2x1x32xf32, #tpu.memory_space<vmem>>, %arg9: memref<2x1x8xf32, #tpu.memory_space<vmem>>, %arg10: memref<2x1x4xf32, #tpu.memory_space<vmem>>, %arg11: memref<2x4xf32, #tpu.memory_space<vmem>>, %arg12: memref<2x4xf32, #tpu.memory_space<vmem>>, %arg13: memref<2x4xf32, #tpu.memory_space<vmem>>) attributes {dimension_semantics = [#tpu.dimension_semantics<parallel>, #tpu.dimension_semantics<arbitrary>], iteration_bounds = array<i64: 1, 1>, scalar_prefetch = 0 : i64, scratch_operands = 3 : i64, tpu.core_type = #tpu.core_type<tc>, window_params = [{transform_indices = @transform_0, window_bounds = array<i64: 2, 32>}, {pipeline_mode = #tpu.pipeline_mode<synchronous>, transform_indices = @transform_1, window_bounds = array<i64: 32, 12>}, {pipeline_mode = #tpu.pipeline_mode<synchronous>, transform_indices = @transform_2, window_bounds = array<i64: 1, 12>}, {transform_indices = @transform_3, window_bounds = array<i64: 2, 1, 4>}, {transform_indices = @transform_4, window_bounds = array<i64: 2, 8, 32>}, {transform_indices = @transform_5, window_bounds = array<i64: 2, 1, 8>}, {transform_indices = @transform_6, window_bounds = array<i64: 2, 1, 32>}, {transform_indices = @transform_7, window_bounds = array<i64: 2, 1, 8>}, {transform_indices = @transform_8, window_bounds = array<i64: 2, 1, 4>}]} {
    %c0_i32 = arith.constant 0 : i32
    %0 = arith.cmpi eq, %arg1, %c0_i32 : i32
    %1 = arith.extui %0 : i1 to i32
    %c0_i32_0 = arith.constant 0 : i32
    %2 = arith.cmpi ne, %1, %c0_i32_0 : i32
    scf.if %2 {
      %c0_25 = arith.constant 0 : index
      %c0_26 = arith.constant 0 : index
      %37 = vector.load %arg2[%c0_25, %c0_26] : memref<2x32xf32, #tpu.memory_space<vmem>>, vector<2x32xf32>
      %c0_27 = arith.constant 0 : index
      %c0_28 = arith.constant 0 : index
      %38 = vector.load %arg3[%c0_27, %c0_28] : memref<32x12xf32, #tpu.memory_space<vmem>>, vector<32x12xf32>
      %cst_29 = arith.constant dense<0.000000e+00> : vector<2x12xf32>
      %39 = tpu.matmul %37, %38, %cst_29 {dimension_numbers = #tpu.dot_dimension_numbers<[1], [0], [0], [1], [0, 0, 1, 1], [], []>} : vector<2x32xf32>, vector<32x12xf32>, vector<2x12xf32> -> vector<2x12xf32>
      %c0_30 = arith.constant 0 : index
      %c0_31 = arith.constant 0 : index
      %40 = vector.load %arg4[%c0_30, %c0_31] : memref<1x12xf32, #tpu.memory_space<vmem>>, vector<1x12xf32>
      %41 = vector.broadcast %40 : vector<1x12xf32> to vector<2x12xf32>
      %42 = arith.addf %39, %41 : vector<2x12xf32>
      %43 = vector.extract_strided_slice %42 {offsets = [0, 0], sizes = [2, 4], strides = [1, 1]} : vector<2x12xf32> to vector<2x4xf32>
      %44 = vector.extract_strided_slice %42 {offsets = [0, 4], sizes = [2, 4], strides = [1, 1]} : vector<2x12xf32> to vector<2x4xf32>
      %45 = vector.extract_strided_slice %42 {offsets = [0, 8], sizes = [2, 4], strides = [1, 1]} : vector<2x12xf32> to vector<2x4xf32>
      %cst_32 = arith.constant dense<0xFF800000> : vector<2xf32>
      %46 = vector.multi_reduction <maximumf>, %43, %cst_32 [1] : vector<2x4xf32> to vector<2xf32>
      %47 = vector.shape_cast %46 : vector<2xf32> to vector<2x1xf32>
      %48 = vector.broadcast %47 : vector<2x1xf32> to vector<2x4xf32>
      %49 = arith.subf %43, %48 : vector<2x4xf32>
      %50 = math.exp %49 : vector<2x4xf32>
      %cst_33 = arith.constant dense<0.000000e+00> : vector<2xf32>
      %51 = vector.multi_reduction <add>, %50, %cst_33 [1] : vector<2x4xf32> to vector<2xf32>
      %52 = vector.shape_cast %51 : vector<2xf32> to vector<2x1xf32>
      %53 = vector.broadcast %52 : vector<2x1xf32> to vector<2x4xf32>
      %54 = arith.divf %50, %53 : vector<2x4xf32>
      %55 = math.exp %44 : vector<2x4xf32>
      %56 = math.exp %45 : vector<2x4xf32>
      %c0_34 = arith.constant 0 : index
      %c0_35 = arith.constant 0 : index
      %c0_36 = arith.constant 0 : index
      %57 = vector.load %arg5[%c0_34, %c0_35, %c0_36] : memref<2x1x4xf32, #tpu.memory_space<vmem>>, vector<2x1x4xf32>
      %58 = vector.shape_cast %57 : vector<2x1x4xf32> to vector<2x4xf32>
      %59 = arith.addf %56, %58 : vector<2x4xf32>
      %c0_37 = arith.constant 0 : index
      %c0_38 = arith.constant 0 : index
      %60 = vector.load %arg13[%c0_37, %c0_38] : memref<2x4xf32, #tpu.memory_space<vmem>>, vector<2x4xf32>
      tpu.vector_store %arg13[%c0_37, %c0_38], %59 {strides = array<i32>} : memref<2x4xf32, #tpu.memory_space<vmem>>, vector<2x4xf32>,
      %61 = vector.shape_cast %59 : vector<2x4xf32> to vector<2x1x4xf32>
      %c0_39 = arith.constant 0 : index
      %c0_40 = arith.constant 0 : index
      %c0_41 = arith.constant 0 : index
      %62 = vector.load %arg10[%c0_39, %c0_40, %c0_41] : memref<2x1x4xf32, #tpu.memory_space<vmem>>, vector<2x1x4xf32>
      tpu.vector_store %arg10[%c0_39, %c0_40, %c0_41], %61 {strides = array<i32>} : memref<2x1x4xf32, #tpu.memory_space<vmem>>, vector<2x1x4xf32>,
      %cst_42 = arith.constant 6.28318548 : f32
      %63 = vector.broadcast %cst_42 : f32 to vector<2x4xf32>
      %64 = arith.mulf %63, %55 : vector<2x4xf32>
      %cst_43 = arith.constant 9.99999997E-7 : f32
      %65 = vector.broadcast %cst_43 : f32 to vector<2x4xf32>
      %66 = arith.addf %64, %65 : vector<2x4xf32>
      %67 = math.sqrt %66 : vector<2x4xf32>
      %68 = arith.divf %54, %67 : vector<2x4xf32>
      %c0_44 = arith.constant 0 : index
      %c0_45 = arith.constant 0 : index
      %69 = vector.load %arg11[%c0_44, %c0_45] : memref<2x4xf32, #tpu.memory_space<vmem>>, vector<2x4xf32>
      tpu.vector_store %arg11[%c0_44, %c0_45], %68 {strides = array<i32>} : memref<2x4xf32, #tpu.memory_space<vmem>>, vector<2x4xf32>,
      %cst_46 = arith.constant 2.000000e+00 : f32
      %70 = vector.broadcast %cst_46 : f32 to vector<2x4xf32>
      %71 = arith.mulf %70, %55 : vector<2x4xf32>
      %cst_47 = arith.constant 9.99999997E-7 : f32
      %72 = vector.broadcast %cst_47 : f32 to vector<2x4xf32>
      %73 = arith.addf %71, %72 : vector<2x4xf32>
      %cst_48 = arith.constant 1.000000e+00 : f32
      %74 = vector.broadcast %cst_48 : f32 to vector<2x4xf32>
      %75 = arith.divf %74, %73 : vector<2x4xf32>
      %c0_49 = arith.constant 0 : index
      %c0_50 = arith.constant 0 : index
      %76 = vector.load %arg12[%c0_49, %c0_50] : memref<2x4xf32, #tpu.memory_space<vmem>>, vector<2x4xf32>
      tpu.vector_store %arg12[%c0_49, %c0_50], %75 {strides = array<i32>} : memref<2x4xf32, #tpu.memory_space<vmem>>, vector<2x4xf32>,
      %cst_51 = arith.constant 0.000000e+00 : f32
      %77 = vector.broadcast %cst_51 : f32 to vector<2x1x32xf32>
      %c0_52 = arith.constant 0 : index
      %c0_53 = arith.constant 0 : index
      %c0_54 = arith.constant 0 : index
      %78 = vector.load %arg8[%c0_52, %c0_53, %c0_54] : memref<2x1x32xf32, #tpu.memory_space<vmem>>, vector<2x1x32xf32>
      tpu.vector_store %arg8[%c0_52, %c0_53, %c0_54], %77 {strides = array<i32>} : memref<2x1x32xf32, #tpu.memory_space<vmem>>, vector<2x1x32xf32>,
    } else {
    }
    %3 = tpu.iota {dimensions = array<i32: 2>} : vector<2x4x8xi32>
    %c8_i32 = arith.constant 8 : i32
    %4 = arith.muli %arg1, %c8_i32 : i32
    %5 = vector.broadcast %4 : i32 to vector<2x4x8xi32>
    %6 = arith.addi %3, %5 : vector<2x4x8xi32>
    %7 = arith.sitofp %6 : vector<2x4x8xi32> to vector<2x4x8xf32>
    %c0 = arith.constant 0 : index
    %c0_1 = arith.constant 0 : index
    %8 = vector.load %arg13[%c0, %c0_1] : memref<2x4xf32, #tpu.memory_space<vmem>>, vector<2x4xf32>
    %9 = vector.shape_cast %8 : vector<2x4xf32> to vector<2x4x1xf32>
    %10 = vector.broadcast %9 : vector<2x4x1xf32> to vector<2x4x8xf32>
    %11 = arith.subf %7, %10 : vector<2x4x8xf32>
    %12 = arith.mulf %11, %11 : vector<2x4x8xf32>
    %cst = arith.constant 0.000000e+00 : f32
    %13 = vector.broadcast %cst : f32 to vector<2x4x8xf32>
    %14 = arith.subf %13, %12 : vector<2x4x8xf32>
    %c0_2 = arith.constant 0 : index
    %c0_3 = arith.constant 0 : index
    %15 = vector.load %arg12[%c0_2, %c0_3] : memref<2x4xf32, #tpu.memory_space<vmem>>, vector<2x4xf32>
    %16 = vector.shape_cast %15 : vector<2x4xf32> to vector<2x4x1xf32>
    %17 = vector.broadcast %16 : vector<2x4x1xf32> to vector<2x4x8xf32>
    %18 = arith.mulf %14, %17 : vector<2x4x8xf32>
    %19 = math.exp %18 : vector<2x4x8xf32>
    %c0_4 = arith.constant 0 : index
    %c0_5 = arith.constant 0 : index
    %20 = vector.load %arg11[%c0_4, %c0_5] : memref<2x4xf32, #tpu.memory_space<vmem>>, vector<2x4xf32>
    %21 = vector.shape_cast %20 : vector<2x4xf32> to vector<2x4x1xf32>
    %22 = vector.broadcast %21 : vector<2x4x1xf32> to vector<2x4x8xf32>
    %23 = arith.mulf %22, %19 : vector<2x4x8xf32>
    %cst_6 = arith.constant dense<0.000000e+00> : vector<2x8xf32>
    %24 = vector.multi_reduction <add>, %23, %cst_6 [1] : vector<2x4x8xf32> to vector<2x8xf32>
    %25 = vector.shape_cast %24 : vector<2x8xf32> to vector<2x1x8xf32>
    %c0_7 = arith.constant 0 : index
    %c0_8 = arith.constant 0 : index
    %c0_9 = arith.constant 0 : index
    %26 = vector.load %arg7[%c0_7, %c0_8, %c0_9] : memref<2x1x8xi32, #tpu.memory_space<vmem>>, vector<2x1x8xi32>
    %c0_i32_10 = arith.constant 0 : i32
    %27 = vector.broadcast %c0_i32_10 : i32 to vector<2x1x8xi32>
    %28 = arith.cmpi eq, %26, %27 : vector<2x1x8xi32>
    %cst_11 = arith.constant -3.40282347E+38 : f32
    %29 = vector.broadcast %cst_11 : f32 to vector<2x1x8xf32>
    %30 = arith.select %28, %29, %25 : vector<2x1x8xi1>, vector<2x1x8xf32>
    %c0_12 = arith.constant 0 : index
    %c0_13 = arith.constant 0 : index
    %c0_14 = arith.constant 0 : index
    %31 = vector.load %arg9[%c0_12, %c0_13, %c0_14] : memref<2x1x8xf32, #tpu.memory_space<vmem>>, vector<2x1x8xf32>
    tpu.vector_store %arg9[%c0_12, %c0_13, %c0_14], %30 {strides = array<i32>} : memref<2x1x8xf32, #tpu.memory_space<vmem>>, vector<2x1x8xf32>,
    %c0_15 = arith.constant 0 : index
    %c0_16 = arith.constant 0 : index
    %c0_17 = arith.constant 0 : index
    %32 = vector.load %arg8[%c0_15, %c0_16, %c0_17] : memref<2x1x32xf32, #tpu.memory_space<vmem>>, vector<2x1x32xf32>
    %c0_18 = arith.constant 0 : index
    %c0_19 = arith.constant 0 : index
    %c0_20 = arith.constant 0 : index
    %33 = vector.load %arg6[%c0_18, %c0_19, %c0_20] : memref<2x8x32xf32, #tpu.memory_space<vmem>>, vector<2x8x32xf32>
    "tpu.trace_start"() <{level = 10 : i32, message = "bqk,bkv->bqv"}> : () -> ()
    %cst_21 = arith.constant dense<0.000000e+00> : vector<2x1x32xf32>
    %34 = tpu.matmul %30, %33, %cst_21 {dimension_numbers = #tpu.dot_dimension_numbers<[2], [1], [1], [2], [0, 0, 0, 1, 1, 2], [0], [0]>} : vector<2x1x8xf32>, vector<2x8x32xf32>, vector<2x1x32xf32> -> vector<2x1x32xf32>
    "tpu.trace_stop"() : () -> ()
    %35 = arith.addf %32, %34 : vector<2x1x32xf32>
    %c0_22 = arith.constant 0 : index
    %c0_23 = arith.constant 0 : index
    %c0_24 = arith.constant 0 : index
    %36 = vector.load %arg8[%c0_22, %c0_23, %c0_24] : memref<2x1x32xf32, #tpu.memory_space<vmem>>, vector<2x1x32xf32>
    tpu.vector_store %arg8[%c0_22, %c0_23, %c0_24], %35 {strides = array<i32>} : memref<2x1x32xf32, #tpu.memory_space<vmem>>, vector<2x1x32xf32>,
    return
  }
  func.func @transform_0(%arg0: i32, %arg1: i32) -> (i32, i32) {
    %c0_i32 = arith.constant 0 : i32
    %c0_i32_0 = arith.constant 0 : i32
    return %arg0, %c0_i32 : i32, i32
  }
  func.func @transform_1(%arg0: i32, %arg1: i32) -> (i32, i32) {
    %c0_i32 = arith.constant 0 : i32
    %c0_i32_0 = arith.constant 0 : i32
    %c0_i32_1 = arith.constant 0 : i32
    return %c0_i32, %c0_i32_0 : i32, i32
  }
  func.func @transform_2(%arg0: i32, %arg1: i32) -> (i32, i32) {
    %c0_i32 = arith.constant 0 : i32
    %c0_i32_0 = arith.constant 0 : i32
    %c0_i32_1 = arith.constant 0 : i32
    return %c0_i32, %c0_i32_0 : i32, i32
  }
  func.func @transform_3(%arg0: i32, %arg1: i32) -> (i32, i32, i32) {
    %c0_i32 = arith.constant 0 : i32
    %c0_i32_0 = arith.constant 0 : i32
    %c0_i32_1 = arith.constant 0 : i32
    return %arg0, %c0_i32, %c0_i32_0 : i32, i32, i32
  }
  func.func @transform_4(%arg0: i32, %arg1: i32) -> (i32, i32, i32) {
    %c0_i32 = arith.constant 0 : i32
    %c0_i32_0 = arith.constant 0 : i32
    return %arg0, %arg1, %c0_i32 : i32, i32, i32
  }
  func.func @transform_5(%arg0: i32, %arg1: i32) -> (i32, i32, i32) {
    %c0_i32 = arith.constant 0 : i32
    %c0_i32_0 = arith.constant 0 : i32
    return %arg0, %c0_i32, %arg1 : i32, i32, i32
  }
  func.func @transform_6(%arg0: i32, %arg1: i32) -> (i32, i32, i32) {
    %c0_i32 = arith.constant 0 : i32
    %c0_i32_0 = arith.constant 0 : i32
    %c0_i32_1 = arith.constant 0 : i32
    return %arg0, %c0_i32, %c0_i32_0 : i32, i32, i32
  }
  func.func @transform_7(%arg0: i32, %arg1: i32) -> (i32, i32, i32) {
    %c0_i32 = arith.constant 0 : i32
    %c0_i32_0 = arith.constant 0 : i32
    return %arg0, %c0_i32, %arg1 : i32, i32, i32
  }
  func.func @transform_8(%arg0: i32, %arg1: i32) -> (i32, i32, i32) {
    %c0_i32 = arith.constant 0 : i32
    %c0_i32_0 = arith.constant 0 : i32
    %c0_i32_1 = arith.constant 0 : i32
    return %arg0, %c0_i32, %c0_i32_0 : i32, i32, i32
  }
}

</mosaic_0001>

<llo_original>
// kernel: tpu_custom_call.1
$region0: #{tpu_custom_call.1}
  #allocation0 [shape = 'u32[]', space=smem, size = 0x4, offset = 0x4, fixed_abs, tag = 'smem constant byte address 0x4 - core index']
  #allocation1 [shape = 'u32[72,128]{1,0:T(1,128)}', space=vmem, size = 0x9000, scoped, tag = 'internal scratch']
  #allocation2 [shape = 'f32[2,4]{1,0:T(2,128)}', space=vmem, size = 0x400, scoped, tag = 'scratch operand']
  #allocation3 [shape = 'f32[2,4]{1,0:T(2,128)}', space=vmem, size = 0x400, scoped, tag = 'scratch operand']
  #allocation4 [shape = 'f32[2,4]{1,0:T(2,128)}', space=vmem, size = 0x400, scoped, tag = 'scratch operand']
  %s0 = inlined_call_operand.vmem [shape: f32[2,32], index: 0, kind: input, shape index: {}]
  %s1 = inlined_call_operand.vmem [shape: f32[32,12], index: 1, kind: input, shape index: {}]
  %s2 = inlined_call_operand.vmem [shape: f32[1,12], index: 2, kind: input, shape index: {}]
  %s3 = inlined_call_operand.vmem [shape: f32[2,1,4], index: 3, kind: input, shape index: {}]
  %s4 = inlined_call_operand.vmem [shape: f32[2,8,32], index: 4, kind: input, shape index: {}]
  %s5 = inlined_call_operand.vmem [shape: s32[2,1,8], index: 5, kind: input, shape index: {}]
  %s6 = inlined_call_operand.hbm [shape: f32[2,1,32], index: 6, kind: output, shape index: {0}]
  %s7 = inlined_call_operand.hbm [shape: f32[2,1,8], index: 7, kind: output, shape index: {1}]
  %s8 = inlined_call_operand.hbm [shape: f32[2,1,4], index: 8, kind: output, shape index: {2}]
  %9 = xla_tuple %s6, %s7, %s8
  %s10 = sld [smem:[#allocation0]]
  $region54: #{tpu_custom_call.1} parent=0
    _
  %s12 = ssub.s32 1, %s10
  %s13 = scalar_select 0, %s12, %s10
  $region1: #{tpu_custom_call.1} parent=0
    #allocation5 [shape = 'u8[1024]{0}', space=vmem, size = 0x400, scoped, tag = 'output window, operand 0, single buffered']
    #allocation6 [shape = 's32[1]{0}', space=sflag, size = 0x4, scoped, tag = 'scoped memory for tpu_custom_call.1']
    #allocation7 [shape = 'u8[1024]{0}', space=vmem, size = 0x400, scoped, tag = 'output window, operand 1, single buffered']
    #allocation8 [shape = 's32[1]{0}', space=sflag, size = 0x4, scoped, tag = 'scoped memory for tpu_custom_call.1']
    #allocation9 [shape = 'u8[1024]{0}', space=vmem, size = 0x400, scoped, tag = 'output window, operand 2, single buffered']
    %14 = vsyncpa [#allocation6], 0
    %15 = vsyncpa [#allocation8], 0
    // Predicated region
    $region2: #{tpu_custom_call.1} parent=1 // pred_check
      _
    $region3: #{tpu_custom_call.1} parent=1 // pred_check_branch
      %17 = sbr.rel (0) target = $region5
    $region4: #{tpu_custom_call.1} parent=1 // pred_region
      _
    $region5: #{tpu_custom_call.1} parent=1 // pred_fallthru
      _
    // Predicated region
    $region6: #{tpu_custom_call.1} parent=1 // pred_check
      _
    $region7: #{tpu_custom_call.1} parent=1 // pred_check_branch
      %19 = sbr.rel (0) target = $region9
    $region8: #{tpu_custom_call.1} parent=1 // pred_region
      _
    $region9: #{tpu_custom_call.1} parent=1 // pred_fallthru
      _
    // Predicated region
    $region10: #{tpu_custom_call.1} parent=1 // pred_check
      _
    $region11: #{tpu_custom_call.1} parent=1 // pred_check_branch
      %21 = sbr.rel (0) target = $region13
    $region12: #{tpu_custom_call.1} parent=1 // pred_region
      _
    $region13: #{tpu_custom_call.1} parent=1 // pred_fallthru
      _
    // Predicated region
    $region14: #{tpu_custom_call.1} parent=1 // pred_check
      _
    $region15: #{tpu_custom_call.1} parent=1 // pred_check_branch
      %23 = sbr.rel (0) target = $region17
    $region16: #{tpu_custom_call.1} parent=1 // pred_region
      _
    $region17: #{tpu_custom_call.1} parent=1 // pred_fallthru
      _
    // Predicated region
    $region18: #{tpu_custom_call.1} parent=1 // pred_check
      _
    $region19: #{tpu_custom_call.1} parent=1 // pred_check_branch
      %25 = sbr.rel (0) target = $region21
    $region20: #{tpu_custom_call.1} parent=1 // pred_region
      _
    $region21: #{tpu_custom_call.1} parent=1 // pred_fallthru
      _
    // Predicated region
    $region22: #{tpu_custom_call.1} parent=1 // pred_check
      _
    $region23: #{tpu_custom_call.1} parent=1 // pred_check_branch
      %27 = sbr.rel (0) target = $region25
    $region24: #{tpu_custom_call.1} parent=1 // pred_region
      _
    $region25: #{tpu_custom_call.1} parent=1 // pred_fallthru
      _
    %p28 = scmp.eq.s32.totalorder 0, 0
    // Predicated region
    $region26: #{tpu_custom_call.1} parent=1 // pred_check
      %p29 = pneg %p28
    $region27: #{tpu_custom_call.1} parent=1 // pred_check_branch
      %31 = sbr.rel (%p29) target = $region29
    $region28: #{tpu_custom_call.1} parent=1 // pred_region
      %v32 = vld [vmem:[%s0] sm:$0x3]
      %v33 = vld [vmem:[%s1] sm:$0xff]
      %v34 = vld [vmem:[%s1 + $0x8] sm:$0xff]
      %v35 = vld [vmem:[%s1 + $0x10] sm:$0xff]
      %v36 = vld [vmem:[%s1 + $0x18] sm:$0xff]
      %v37 = vld [vmem:[%s2] sm:$0x1]
      %v39 = vperm.slane %v37, 0
      %vm41 = vcmask 261120
      %v43 = vsel %vm41, %v32, 0
      %45 = vmatpush.msra.mxu0 0.0
      %46 = vmatpush.msra.mxu0 0.0
      %47 = vmatpush.msra.mxu0 0.0
      %48 = vmatpush.msra.mxu0 0.0
      %49 = vmatpush.msra.mxu0 0.0
      %50 = vmatpush.msra.mxu0 0.0
      %51 = vmatpush.msra.mxu0 0.0
      %52 = vmatpush.msra.mxu0 0.0
      %53 = vmatpush.msra.mxu0 0.0
      %54 = vmatpush.msra.mxu0 0.0
      %55 = vmatpush.msra.mxu0 0.0
      %56 = vmatpush.msra.mxu0 0.0
      %57 = vmatpush.msra.mxu0 %v36
      %58 = vmatpush.msra.mxu0 %v35
      %59 = vmatpush.msra.mxu0 %v34
      %60 = vmatpush.msra.mxu0 %v33
      %61 = vmatmul.f32.gmra.mxu0 %v43
      %v62 = vpop.f32.mrf.mxu0
      %v63 = vadd.f32 %v39, %v62
      %64 = vdwg.mxu0
      %vm65 = vcmask 25600
      %v66 = vsel %vm65, %v63, -inf
      %67 = vmax.xlane.f32.xlu0 %v66
      %v68 = vpop.xlane.xlu0 %67
      %v69 = vsub.f32 %v63, %v68
      %v70 = vmul.f32 %v69, 1.442695
      %v71 = vpow.pop %v70
      %v72 = vsel %vm65, %v71, 0.0
      %73 = vadd.xlane.f32.xlu0 %v72
      %v74 = vpop.xlane.xlu0 %73
      %v75 = vrcp.pop %v74
      %v76 = vmul.f32 %v74, %v75
      %v77 = vsub.f32 1.0, %v76
      %v78 = vmul.f32 %v75, %v77
      %v79 = vadd.f32 %v75, %v78
      %vm80 = vweird.f32 %v74
      %vm81 = vweird.f32 %v75
      %vm82 = vmor %vm80, %vm81
      %v83 = vsel %vm82, %v75, %v79
      %v84 = vand.u32 2147483647, %v74
      %vm85 = vcmp.eq.f32.partialorder %v84, 8.507059e+37
      %v86 = vand.u32 %v74, 2147483648
      %v87 = vor.u32 1.1754944e-38, %v86
      %v88 = vsel %vm85, %v87, %v83
      %v89 = vmul.f32 %v71, %v88
      %v90 = vmul.f32 %v63, 1.442695
      %v91 = vpow.pop %v90
      %v92 = vld [vmem:[%s3] sm:$0x1]
      %v93 = vld [vmem:[%s3 + $0x1] sm:$0x1]
      %96 = vst [vmem:[#allocation1] ss:$9 sm:$0xff] %v92
      %s97 = scalar_lea.vmem [#allocation1], 1
      %98 = vst [vmem:[%s97] ss:$9 sm:$0xff] %v93
      %v99 = vld [vmem:[#allocation1] sm:$0xff]
      %100 = vrot.lane.b32.xlu0 %v99, 8
      %v101 = vpop.permute.xlu0 %100
      %v103 = vadd.f32 %v91, %v101
      %105 = vrot.lane.b32.xlu0 %v103, 120
      %v106 = vpop.permute.xlu0 %105
      %108 = vst.msk [vmem:[#allocation4] sm:$0x3] %vm65, %v106
      %v109 = vrot.slane %v103, 1
      %v110 = vperm.slane %v103, 0
      %v111 = vperm.slane %v109, 0
      %112 = vrot.lane.b32.xlu0 %v110, 120
      %v113 = vpop.permute.xlu0 %112
      %114 = vrot.lane.b32.xlu0 %v111, 120
      %v115 = vpop.permute.xlu0 %114
      %vm118 = vcmask 24576
      %119 = vst.msk [vmem:[#allocation9] sm:$0x1] %vm118, %v113
      %120 = vst.msk [vmem:[#allocation9 + $0x1] sm:$0x1] %vm118, %v115
      %v121 = vmul.f32 %v91, 6.2831855
      %v122 = vadd.f32 %v121, 1e-06
      %v123 = vrsqrt.pop %v122
      %v124 = vmul.f32 %v123, %v122
      %v125 = vmul.f32 %v124, %v123
      %v126 = vmul.f32 0.5, %v125
      %v127 = vsub.f32 1.5, %v126
      %v128 = vmul.f32 %v123, %v127
      %v129 = vmul.f32 %v122, %v128
      %vm130 = vcmp.eq.f32.partialorder %v122, inf
      %v131 = vsel %vm130, %v122, %v129
      %vm132 = vcmp.eq.f32.partialorder %v122, 0.0
      %v133 = vand.u32 %v122, 2147483648
      %v134 = vsel %vm132, %v133, %v131
      %136 = vrot.lane.b32.xlu0 %v134, 124
      %v137 = vpop.permute.xlu0 %136
      %v139 = vrcp.pop %v137
      %v140 = vmul.f32 %v137, %v139
      %v141 = vsub.f32 1.0, %v140
      %v142 = vmul.f32 %v139, %v141
      %v143 = vadd.f32 %v139, %v142
      %vm144 = vweird.f32 %v137
      %vm145 = vweird.f32 %v139
      %vm146 = vmor %vm144, %vm145
      %v147 = vsel %vm146, %v139, %v143
      %v148 = vand.u32 2147483647, %v137
      %vm149 = vcmp.eq.f32.partialorder %v148, 8.507059e+37
      %v150 = vand.u32 %v137, 2147483648
      %v151 = vor.u32 1.1754944e-38, %v150
      %v152 = vsel %vm149, %v151, %v147
      %v153 = vmul.f32 %v89, %v152
      %154 = vst.msk [vmem:[#allocation2] sm:$0x3] %vm65, %v153
      %v155 = vmul.f32 %v91, 2.0
      %v156 = vadd.f32 %v155, 1e-06
      %v157 = vrcp.pop %v156
      %v158 = vmul.f32 %v156, %v157
      %v159 = vsub.f32 1.0, %v158
      %v160 = vmul.f32 %v157, %v159
      %v161 = vadd.f32 %v157, %v160
      %vm162 = vweird.f32 %v156
      %vm163 = vweird.f32 %v157
      %vm164 = vmor %vm162, %vm163
      %v165 = vsel %vm164, %v157, %v161
      %v166 = vand.u32 2147483647, %v156
      %vm167 = vcmp.eq.f32.partialorder %v166, 8.507059e+37
      %v168 = vand.u32 %v156, 2147483648
      %v169 = vor.u32 1.1754944e-38, %v168
      %v170 = vsel %vm167, %v169, %v165
      %v171 = vmul.f32 1.0, %v170
      %173 = vrot.lane.b32.xlu0 %v171, 124
      %v174 = vpop.permute.xlu0 %173
      %176 = vst.msk [vmem:[#allocation3] sm:$0x3] %vm65, %v174
      %vm177 = vcmask 253952
      %178 = vst.msk [vmem:[#allocation5] sm:$0x1] %vm177, 0.0
      %179 = vst.msk [vmem:[#allocation5 + $0x1] sm:$0x1] %vm177, 0.0
    $region29: #{tpu_custom_call.1} parent=1 // pred_fallthru
      _
    %v180 = vlaneseq
    %v181 = vand.u32 %v180, 127
    %s182 = smul.u32 0, 8
    %v183 = vstv %s182
    %v184 = vadd.s32 %v181, %v183
    %v185 = vcvt.s32.f32 %v184
    %v186 = vld [vmem:[#allocation4] sm:$0x3]
    %v187 = vperm.slane %v186, 0
    %v188 = vlaneseq
    %v189 = vshrl.u32 %v188, 7
    %191 = vset.pattern.permute.xlu0 %v189
    %192 = vperm.xlu0 %191, %v187
    %v193 = vpop.permute.xlu0 %192
    %v194 = vperm.slane %v186, 1
    %v195 = vlaneseq
    %v196 = vshrl.u32 %v195, 7
    %198 = vset.pattern.permute.xlu0 %v196
    %199 = vperm.xlu0 %198, %v194
    %v200 = vpop.permute.xlu0 %199
    %v201 = vsub.f32 %v185, %v193
    %v202 = vsub.f32 %v185, %v200
    %v203 = vmul.f32 %v201, %v201
    %v204 = vmul.f32 %v202, %v202
    %v205 = vsub.f32 0.0, %v203
    %v206 = vsub.f32 0.0, %v204
    %v207 = vld [vmem:[#allocation3] sm:$0x3]
    %v208 = vperm.slane %v207, 0
    %v209 = vlaneseq
    %v210 = vshrl.u32 %v209, 7
    %212 = vset.pattern.permute.xlu0 %v210
    %213 = vperm.xlu0 %212, %v208
    %v214 = vpop.permute.xlu0 %213
    %v215 = vperm.slane %v207, 1
    %v216 = vlaneseq
    %v217 = vshrl.u32 %v216, 7
    %219 = vset.pattern.permute.xlu0 %v217
    %220 = vperm.xlu0 %219, %v215
    %v221 = vpop.permute.xlu0 %220
    %v222 = vmul.f32 %v205, %v214
    %v223 = vmul.f32 %v206, %v221
    %v224 = vmul.f32 %v222, 1.442695
    %v225 = vpow.pop %v224
    %v226 = vmul.f32 %v223, 1.442695
    %v227 = vpow.pop %v226
    %v228 = vld [vmem:[#allocation2] sm:$0x3]
    %v229 = vperm.slane %v228, 0
    %v230 = vlaneseq
    %v231 = vshrl.u32 %v230, 7
    %233 = vset.pattern.permute.xlu0 %v231
    %234 = vperm.xlu0 %233, %v229
    %v235 = vpop.permute.xlu0 %234
    %v236 = vperm.slane %v228, 1
    %v237 = vlaneseq
    %v238 = vshrl.u32 %v237, 7
    %240 = vset.pattern.permute.xlu0 %v238
    %241 = vperm.xlu0 %240, %v236
    %v242 = vpop.permute.xlu0 %241
    %v243 = vmul.f32 %v235, %v225
    %v244 = vmul.f32 %v242, %v227
    %vm245 = vcmask 60416
    %v246 = vsel %vm245, %v243, 0.0
    %v247 = vrot.slane %v246, 4
    %v248 = vadd.f32 %v246, %v247
    %v249 = vrot.slane %v248, 2
    %v250 = vadd.f32 %v248, %v249
    %v251 = vrot.slane %v250, 1
    %v252 = vadd.f32 %v250, %v251
    %v253 = vsel %vm245, %v244, 0.0
    %v254 = vrot.slane %v253, 4
    %v255 = vadd.f32 %v253, %v254
    %v256 = vrot.slane %v255, 2
    %v257 = vadd.f32 %v255, %v256
    %v258 = vrot.slane %v257, 1
    %v259 = vadd.f32 %v257, %v258
    %v260 = vld [vmem:[%s5] sm:$0x1]
    %v261 = vld [vmem:[%s5 + $0x1] sm:$0x1]
    %vm262 = vcmp.eq.s32.totalorder %v260, 0
    %vm263 = vcmp.eq.s32.totalorder %v261, 0
    %v264 = vsel %vm262, -3.4028235e+38, %v252
    %v265 = vsel %vm263, -3.4028235e+38, %v259
    %vm266 = vcmask 57344
    %267 = vst.msk [vmem:[#allocation7] sm:$0x1] %vm266, %v264
    %268 = vst.msk [vmem:[#allocation7 + $0x1] sm:$0x1] %vm266, %v265
    %v269 = vld [vmem:[#allocation5] sm:$0x1]
    %v270 = vld [vmem:[#allocation5 + $0x1] sm:$0x1]
    %v271 = vld [vmem:[%s4] sm:$0xff]
    %v272 = vld [vmem:[%s4 + $0x8] sm:$0xff]
    %vm273 = vcmask 64512
    %v275 = vsel %vm273, %v264, 0
    %277 = vmatpush.msra.mxu0 0.0
    %278 = vmatpush.msra.mxu0 0.0
    %279 = vmatpush.msra.mxu0 0.0
    %280 = vmatpush.msra.mxu0 0.0
    %281 = vmatpush.msra.mxu0 0.0
    %282 = vmatpush.msra.mxu0 0.0
    %283 = vmatpush.msra.mxu0 0.0
    %284 = vmatpush.msra.mxu0 0.0
    %285 = vmatpush.msra.mxu0 0.0
    %286 = vmatpush.msra.mxu0 0.0
    %287 = vmatpush.msra.mxu0 0.0
    %288 = vmatpush.msra.mxu0 0.0
    %289 = vmatpush.msra.mxu0 0.0
    %290 = vmatpush.msra.mxu0 0.0
    %291 = vmatpush.msra.mxu0 0.0
    %292 = vmatpush.msra.mxu0 %v271
    %293 = vmatmul.f32.gmra.mxu0 %v275
    %v294 = vpop.f32.mrf.mxu0
    %v295 = vadd.f32 0.0, %v294
    %296 = vdwg.mxu0
    %v298 = vsel %vm273, %v265, 0
    %300 = vmatpush.msra.mxu0 0.0
    %301 = vmatpush.msra.mxu0 0.0
    %302 = vmatpush.msra.mxu0 0.0
    %303 = vmatpush.msra.mxu0 0.0
    %304 = vmatpush.msra.mxu0 0.0
    %305 = vmatpush.msra.mxu0 0.0
    %306 = vmatpush.msra.mxu0 0.0
    %307 = vmatpush.msra.mxu0 0.0
    %308 = vmatpush.msra.mxu0 0.0
    %309 = vmatpush.msra.mxu0 0.0
    %310 = vmatpush.msra.mxu0 0.0
    %311 = vmatpush.msra.mxu0 0.0
    %312 = vmatpush.msra.mxu0 0.0
    %313 = vmatpush.msra.mxu0 0.0
    %314 = vmatpush.msra.mxu0 0.0
    %315 = vmatpush.msra.mxu0 %v272
    %316 = vmatmul.f32.gmra.mxu0 %v298
    %v317 = vpop.f32.mrf.mxu0
    %v318 = vadd.f32 0.0, %v317
    %319 = vdwg.mxu0
    %v320 = vadd.f32 %v269, %v295
    %v321 = vadd.f32 %v270, %v318
    %vm322 = vcmask 253952
    %323 = vst.msk [vmem:[#allocation5] sm:$0x1] %vm322, %v320
    %324 = vst.msk [vmem:[#allocation5 + $0x1] sm:$0x1] %vm322, %v321
    // Predicated region
    $region30: #{tpu_custom_call.1} parent=1 // pred_check
      _
    $region31: #{tpu_custom_call.1} parent=1 // pred_check_branch
      %326 = sbr.rel (0) target = $region33
    $region32: #{tpu_custom_call.1} parent=1 // pred_region
      %328 = vsyncadd [#allocation6], 0
      %s329 = sshll.u32 [#allocation5], 4
      %s330 = int_to_ptr.vmem [resolvable:$true] %s329
      %s331 = sshll.u32 %s6, 4
      %s332 = int_to_ptr.hbm [resolvable:$true] %s331
      %337 = dma.vmem_to_hbm [thread:$0]  %s330, 32, %s332, [#allocation6], 16, 16, 1
    $region33: #{tpu_custom_call.1} parent=1 // pred_fallthru
      _
    // Predicated region
    $region34: #{tpu_custom_call.1} parent=1 // pred_check
      _
    $region35: #{tpu_custom_call.1} parent=1 // pred_check_branch
      %339 = sbr.rel (0) target = $region37
    $region36: #{tpu_custom_call.1} parent=1 // pred_region
      %341 = vsyncadd [#allocation8], 0
      %s342 = sshll.u32 [#allocation7], 4
      %s343 = int_to_ptr.vmem [resolvable:$true] %s342
      %s344 = sshll.u32 %s7, 4
      %s345 = int_to_ptr.hbm [resolvable:$true] %s344
      %350 = dma.vmem_to_hbm [thread:$0]  %s343, 32, %s345, [#allocation8], 16, 16, 1
    $region37: #{tpu_custom_call.1} parent=1 // pred_fallthru
      _
    // Predicated region
    $region38: #{tpu_custom_call.1} parent=1 // pred_check
      _
    $region39: #{tpu_custom_call.1} parent=1 // pred_check_branch
      %352 = sbr.rel (0) target = $region41
    $region40: #{tpu_custom_call.1} parent=1 // pred_region
      %354 = vsyncadd [#allocation8], 0
      %s355 = sshll.u32 [#allocation9], 4
      %s356 = int_to_ptr.vmem [resolvable:$true] %s355
      %s357 = sshll.u32 %s8, 4
      %s358 = int_to_ptr.hbm [resolvable:$true] %s357
      %363 = dma.vmem_to_hbm [thread:$0]  %s356, 32, %s358, [#allocation8], 16, 16, 1
    $region41: #{tpu_custom_call.1} parent=1 // pred_fallthru
      _
    // Predicated region
    $region42: #{tpu_custom_call.1} parent=1 // pred_check
      _
    $region43: #{tpu_custom_call.1} parent=1 // pred_check_branch
      %365 = sbr.rel (0) target = $region45
    $region44: #{tpu_custom_call.1} parent=1 // pred_region
      %367 = dma.done [#allocation6], 32
    $region45: #{tpu_custom_call.1} parent=1 // pred_fallthru
      _
    // Predicated region
    $region46: #{tpu_custom_call.1} parent=1 // pred_check
      _
    $region47: #{tpu_custom_call.1} parent=1 // pred_check_branch
      %369 = sbr.rel (0) target = $region49
    $region48: #{tpu_custom_call.1} parent=1 // pred_region
      %371 = dma.done [#allocation8], 32
    $region49: #{tpu_custom_call.1} parent=1 // pred_fallthru
      _
    // Predicated region
    $region50: #{tpu_custom_call.1} parent=1 // pred_check
      _
    $region51: #{tpu_custom_call.1} parent=1 // pred_check_branch
      %373 = sbr.rel (0) target = $region53
    $region52: #{tpu_custom_call.1} parent=1 // pred_region
      %375 = dma.done [#allocation8], 32
    $region53: #{tpu_custom_call.1} parent=1 // pred_fallthru
      _
    %376 = vsyncpa [#allocation6], 1
    %377 = vsyncpa [#allocation8], 1

</llo_original>
